<compile_context>
chip_gen: v7x
topology: tpu7x:2x2x1
jax: 0.10.0
libtpu: 0.0.40
codegen_flags: <defaults>
</compile_context>

<pallas_src>
import functools

import jax
import jax.numpy as jnp
from jax.experimental import pallas as pl
from jax.experimental.pallas import tpu as pltpu


def _round_up(n, m):
    return ((n + m - 1) // m) * m


def _critic_kernel(x_ref, w1_ref, b1_ref, w2_ref, b2_ref, wq_ref, bq_ref,
                   q_ref):
    # Layer 1: single MXU dot over the fused (state || action) input.
    h1 = jnp.dot(x_ref[...], w1_ref[...], preferred_element_type=jnp.float32)
    h1 = jnp.maximum(h1 + b1_ref[...], 0.0)                  # f32 [tb, fc1a]

    # Layer 2: bf16 operands, f32 accumulation; bias / ReLU in f32.
    h2 = jnp.dot(h1.astype(jnp.bfloat16), w2_ref[...],
                 preferred_element_type=jnp.float32)
    h2 = jnp.maximum(h2 + b2_ref[...], 0.0)                  # f32 [tb, fc2p]

    # q head (N=1): VPU multiply + lane reduction; bq is a scalar in SMEM.
    q = jnp.sum(h2 * wq_ref[...], axis=-1, keepdims=True) + bq_ref[0, 0]
    q_ref[...] = q.astype(q_ref.dtype)                       # [tb, 1]


def _choose_batch_tile(B, tile_b):
    """Batch tile: always a multiple of 16; keep the grid >= 2 when possible."""
    b16 = _round_up(B, 16)                   # bf16 sublane quantum
    tb = _round_up(min(tile_b, b16), 16)     # tb itself is always 16-aligned
    # If one tile would cover the whole batch, split in two so the "parallel"
    # batch axis can be sharded across v7x's two TensorCores (no-op elsewhere).
    if tb >= b16 and b16 >= 32:
        tb = _round_up(b16 // 2, 16)
    return tb


@functools.partial(jax.jit, static_argnames=("tile_b",))
def critic_forward(state, action, params, tile_b=1024):
    """state: [B, input_dims], action: [B, n_agents*n_actions] -> q: [B, 1]."""
    w1, b1, w2, b2, wq, bq = (params["w1"], params["b1"], params["w2"],
                              params["b2"], params["wq"], params["bq"])
    B, d_state = state.shape
    d_action = action.shape[1]
    d_in = d_state + d_action
    fc1, fc2 = w1.shape[1], w2.shape[1]

    # --- padded feature dims (zero padding is an exact identity).
    d_in_p = _round_up(d_in, 16)      # layer-1 contraction dim (bf16 K)
    fc1a = _round_up(fc1, 16)         # layer-2 contraction dim (bf16 K) only
    fc2p = _round_up(fc2, 128)        # lane-dense hidden width for h2 / wq

    w1p = jnp.pad(w1, ((0, d_in_p - d_in), (0, fc1a - fc1))).astype(jnp.bfloat16)
    b1p = jnp.pad(b1, ((0, 0), (0, fc1a - fc1)))                       # f32
    w2p = jnp.pad(w2, ((0, fc1a - fc1), (0, fc2p - fc2))).astype(jnp.bfloat16)
    b2p = jnp.pad(b2, ((0, 0), (0, fc2p - fc2)))                       # f32
    wqp = jnp.pad(wq.reshape(1, fc2), ((0, 0), (0, fc2p - fc2)))       # f32
    bqs = bq.reshape(1, 1).astype(jnp.float32)                         # SMEM

    # --- fused (state || action) bf16 input, padded to [Bp, d_in_p].
    tb = _choose_batch_tile(B, tile_b)
    Bp = _round_up(B, tb)
    x = jnp.concatenate([state, action], axis=1).astype(jnp.bfloat16)
    x = jnp.pad(x, ((0, Bp - B), (0, d_in_p - d_in)))
    grid = (Bp // tb,)

    const = lambda shape: pl.BlockSpec(shape, lambda i: tuple(0 for _ in shape))

    # Scoped-VMEM estimate: double-buffered x/out tiles + resident weights +
    # f32 intermediates.  Only raise the limit above v5e's 16 MiB default when
    # a huge batch tile actually needs it.
    vmem_bytes = (2 * tb * d_in_p * 2 + 2 * tb * 4
                  + (d_in_p * fc1a + fc1a * fc2p) * 2
                  + (fc1a + 2 * fc2p) * 4
                  + tb * (fc1a + fc2p) * 4)
    compiler_kwargs = dict(dimension_semantics=("parallel",))
    if 2 * vmem_bytes > 16 * 1024 * 1024:
        compiler_kwargs["vmem_limit_bytes"] = int(
            min(2 * vmem_bytes, 48 * 1024 * 1024))

    q = pl.pallas_call(
        _critic_kernel,
        out_shape=jax.ShapeDtypeStruct((Bp, 1), jnp.float32),
        grid=grid,
        in_specs=[
            pl.BlockSpec((tb, d_in_p), lambda i: (i, 0)),        # fused x tile
            const((d_in_p, fc1a)),                               # w1
            const((1, fc1a)),                                    # b1
            const((fc1a, fc2p)),                                 # w2
            const((1, fc2p)),                                    # b2
            const((1, fc2p)),                                    # wq (row)
            pl.BlockSpec(memory_space=pltpu.MemorySpace.SMEM),   # bq scalar
        ],
        out_specs=pl.BlockSpec((tb, 1), lambda i: (i, 0)),
        compiler_params=pltpu.CompilerParams(**compiler_kwargs),
    )(x, w1p, b1p, w2p, b2p, wqp, bqs)

    return q[:B]


def init_critic_params(key, input_dims, fc1_dims, fc2_dims, n_agents, n_actions):
    """Deterministic init matching nn.Linear default U(-1/sqrt(fan_in), 1/sqrt(fan_in)).

    Weights are stored [in, out] (transpose of PyTorch's [out, in]) for x @ W.
    """
    d_in = input_dims + n_agents * n_actions

    def linear(k, fan_in, fan_out):
        kw, kb = jax.random.split(k)
        bound = 1.0 / jnp.sqrt(fan_in)
        w = jax.random.uniform(kw, (fan_in, fan_out), jnp.float32, -bound, bound)
        b = jax.random.uniform(kb, (1, fan_out), jnp.float32, -bound, bound)
        return w, b

    k1, k2, k3 = jax.random.split(key, 3)
    w1, b1 = linear(k1, d_in, fc1_dims)
    w2, b2 = linear(k2, fc1_dims, fc2_dims)
    wq, bq = linear(k3, fc2_dims, 1)
    return {"w1": w1, "b1": b1, "w2": w2, "b2": b2, "wq": wq, "bq": bq}


if __name__ == "__main__":
    # Small shapes consistent with the module's forward:
    #   state: [B, input_dims], action: [B, n_agents * n_actions]
    B, input_dims, fc1_dims, fc2_dims = 40, 16, 32, 32
    n_agents, n_actions = 2, 4

    key = jax.random.PRNGKey(0)
    k_params, k_state, k_action = jax.random.split(key, 3)

    params = init_critic_params(k_params, input_dims, fc1_dims, fc2_dims,
                                n_agents, n_actions)
    state = jax.random.normal(k_state, (B, input_dims), jnp.float32)
    action = jax.random.normal(k_action, (B, n_agents * n_actions), jnp.float32)

    # Default tile_b: _choose_batch_tile splits B=40 into a 2-step grid
    # (tb=32, Bp=64), exercising both pipelining and ragged-batch padding.
    q = critic_forward(state, action, params)
    jax.block_until_ready(q)

    # Reference with the same bf16-operand / f32-accumulation math as the kernel.
    x = jnp.concatenate([state, action], axis=1)
    h1 = jnp.maximum(
        jnp.dot(x.astype(jnp.bfloat16), params["w1"].astype(jnp.bfloat16),
                preferred_element_type=jnp.float32) + params["b1"], 0.0)
    h2 = jnp.maximum(
        jnp.dot(h1.astype(jnp.bfloat16), params["w2"].astype(jnp.bfloat16),
                preferred_element_type=jnp.float32) + params["b2"], 0.0)
    q_ref = h2 @ params["wq"] + params["bq"]

    assert q.shape == (B, 1)
    assert jnp.allclose(q, q_ref, atol=1e-2, rtol=1e-2)

    print("KERNEL_OK")
</pallas_src>

<mosaic_0001>
module attributes {stable_mosaic.version = 11 : i64} {
  func.func @_critic_kernel(%arg0: i32, %arg1: memref<32x32xbf16, #tpu.memory_space<vmem>>, %arg2: memref<32x32xbf16, #tpu.memory_space<vmem>>, %arg3: memref<1x32xf32, #tpu.memory_space<vmem>>, %arg4: memref<32x128xbf16, #tpu.memory_space<vmem>>, %arg5: memref<1x128xf32, #tpu.memory_space<vmem>>, %arg6: memref<1x128xf32, #tpu.memory_space<vmem>>, %arg7: memref<1x1xf32, #tpu.memory_space<smem>>, %arg8: memref<32x1xf32, #tpu.memory_space<vmem>>) attributes {dimension_semantics = [#tpu.dimension_semantics<parallel>], iteration_bounds = array<i64: 2>, scalar_prefetch = 0 : i64, scratch_operands = 0 : i64, tpu.core_type = #tpu.core_type<tc>, window_params = [{transform_indices = @transform_0, window_bounds = array<i64: 32, 32>}, {pipeline_mode = #tpu.pipeline_mode<synchronous>, transform_indices = @transform_1, window_bounds = array<i64: 32, 32>}, {pipeline_mode = #tpu.pipeline_mode<synchronous>, transform_indices = @transform_2, window_bounds = array<i64: 1, 32>}, {pipeline_mode = #tpu.pipeline_mode<synchronous>, transform_indices = @transform_3, window_bounds = array<i64: 32, 128>}, {pipeline_mode = #tpu.pipeline_mode<synchronous>, transform_indices = @transform_4, window_bounds = array<i64: 1, 128>}, {pipeline_mode = #tpu.pipeline_mode<synchronous>, transform_indices = @transform_5, window_bounds = array<i64: 1, 128>}, {transform_indices = @transform_6, window_bounds = array<i64: 1, 1>}, {transform_indices = @transform_7, window_bounds = array<i64: 32, 1>}]} {
    %c0 = arith.constant 0 : index
    %c0_0 = arith.constant 0 : index
    %0 = vector.load %arg1[%c0, %c0_0] : memref<32x32xbf16, #tpu.memory_space<vmem>>, vector<32x32xbf16>
    %c0_1 = arith.constant 0 : index
    %c0_2 = arith.constant 0 : index
    %1 = vector.load %arg2[%c0_1, %c0_2] : memref<32x32xbf16, #tpu.memory_space<vmem>>, vector<32x32xbf16>
    %cst = arith.constant dense<0.000000e+00> : vector<32x32xf32>
    %2 = tpu.matmul %0, %1, %cst {dimension_numbers = #tpu.dot_dimension_numbers<[1], [0], [0], [1], [0, 0, 1, 1], [], []>} : vector<32x32xbf16>, vector<32x32xbf16>, vector<32x32xf32> -> vector<32x32xf32>
    %c0_3 = arith.constant 0 : index
    %c0_4 = arith.constant 0 : index
    %3 = vector.load %arg3[%c0_3, %c0_4] : memref<1x32xf32, #tpu.memory_space<vmem>>, vector<1x32xf32>
    %4 = vector.broadcast %3 : vector<1x32xf32> to vector<32x32xf32>
    %5 = arith.addf %2, %4 : vector<32x32xf32>
    %cst_5 = arith.constant 0.000000e+00 : f32
    %6 = vector.broadcast %cst_5 : f32 to vector<32x32xf32>
    %7 = arith.maximumf %5, %6 : vector<32x32xf32>
    %8 = arith.truncf %7 : vector<32x32xf32> to vector<32x32xbf16>
    %c0_6 = arith.constant 0 : index
    %c0_7 = arith.constant 0 : index
    %9 = vector.load %arg4[%c0_6, %c0_7] : memref<32x128xbf16, #tpu.memory_space<vmem>>, vector<32x128xbf16>
    %cst_8 = arith.constant dense<0.000000e+00> : vector<32x128xf32>
    %10 = tpu.matmul %8, %9, %cst_8 {dimension_numbers = #tpu.dot_dimension_numbers<[1], [0], [0], [1], [0, 0, 1, 1], [], []>} : vector<32x32xbf16>, vector<32x128xbf16>, vector<32x128xf32> -> vector<32x128xf32>
    %c0_9 = arith.constant 0 : index
    %c0_10 = arith.constant 0 : index
    %11 = vector.load %arg5[%c0_9, %c0_10] : memref<1x128xf32, #tpu.memory_space<vmem>>, vector<1x128xf32>
    %12 = vector.broadcast %11 : vector<1x128xf32> to vector<32x128xf32>
    %13 = arith.addf %10, %12 : vector<32x128xf32>
    %cst_11 = arith.constant 0.000000e+00 : f32
    %14 = vector.broadcast %cst_11 : f32 to vector<32x128xf32>
    %15 = arith.maximumf %13, %14 : vector<32x128xf32>
    %c0_12 = arith.constant 0 : index
    %c0_13 = arith.constant 0 : index
    %16 = vector.load %arg6[%c0_12, %c0_13] : memref<1x128xf32, #tpu.memory_space<vmem>>, vector<1x128xf32>
    %17 = vector.broadcast %16 : vector<1x128xf32> to vector<32x128xf32>
    %18 = arith.mulf %15, %17 : vector<32x128xf32>
    %cst_14 = arith.constant dense<0.000000e+00> : vector<32xf32>
    %19 = vector.multi_reduction <add>, %18, %cst_14 [1] : vector<32x128xf32> to vector<32xf32>
    %20 = vector.shape_cast %19 : vector<32xf32> to vector<32x1xf32>
    %c0_15 = arith.constant 0 : index
    %c0_16 = arith.constant 0 : index
    %21 = memref.load %arg7[%c0_15, %c0_16] : memref<1x1xf32, #tpu.memory_space<smem>>
    %22 = vector.broadcast %21 : f32 to vector<32x1xf32>
    %23 = arith.addf %20, %22 : vector<32x1xf32>
    %c0_17 = arith.constant 0 : index
    %c0_18 = arith.constant 0 : index
    %24 = vector.load %arg8[%c0_17, %c0_18] : memref<32x1xf32, #tpu.memory_space<vmem>>, vector<32x1xf32>
    tpu.vector_store %arg8[%c0_17, %c0_18], %23 {strides = array<i32>} : memref<32x1xf32, #tpu.memory_space<vmem>>, vector<32x1xf32>,
    return
  }
  func.func @transform_0(%arg0: i32) -> (i32, i32) {
    %c0_i32 = arith.constant 0 : i32
    %c0_i32_0 = arith.constant 0 : i32
    return %arg0, %c0_i32 : i32, i32
  }
  func.func @transform_1(%arg0: i32) -> (i32, i32) {
    %c0_i32 = arith.constant 0 : i32
    %c0_i32_0 = arith.constant 0 : i32
    %c0_i32_1 = arith.constant 0 : i32
    return %c0_i32, %c0_i32_0 : i32, i32
  }
  func.func @transform_2(%arg0: i32) -> (i32, i32) {
    %c0_i32 = arith.constant 0 : i32
    %c0_i32_0 = arith.constant 0 : i32
    %c0_i32_1 = arith.constant 0 : i32
    return %c0_i32, %c0_i32_0 : i32, i32
  }
  func.func @transform_3(%arg0: i32) -> (i32, i32) {
    %c0_i32 = arith.constant 0 : i32
    %c0_i32_0 = arith.constant 0 : i32
    %c0_i32_1 = arith.constant 0 : i32
    return %c0_i32, %c0_i32_0 : i32, i32
  }
  func.func @transform_4(%arg0: i32) -> (i32, i32) {
    %c0_i32 = arith.constant 0 : i32
    %c0_i32_0 = arith.constant 0 : i32
    %c0_i32_1 = arith.constant 0 : i32
    return %c0_i32, %c0_i32_0 : i32, i32
  }
  func.func @transform_5(%arg0: i32) -> (i32, i32) {
    %c0_i32 = arith.constant 0 : i32
    %c0_i32_0 = arith.constant 0 : i32
    %c0_i32_1 = arith.constant 0 : i32
    return %c0_i32, %c0_i32_0 : i32, i32
  }
  func.func @transform_6(%arg0: i32) -> (i32, i32) {
    %c0_i32 = arith.constant 0 : i32
    %c0_i32_0 = arith.constant 0 : i32
    %c0_i32_1 = arith.constant 0 : i32
    return %c0_i32, %c0_i32_0 : i32, i32
  }
  func.func @transform_7(%arg0: i32) -> (i32, i32) {
    %c0_i32 = arith.constant 0 : i32
    %c0_i32_0 = arith.constant 0 : i32
    return %arg0, %c0_i32 : i32, i32
  }
}

</mosaic_0001>

<llo_original>
// kernel: critic_forward.1
$region0: #{critic_forward.1}
  #allocation0 [shape = 'u32[]', space=smem, size = 0x4, offset = 0x4, fixed_abs, tag = 'smem constant byte address 0x4 - core index']
  #allocation1 [shape = 'u32[144,128]{1,0:T(1,128)}', space=vmem, size = 0x12000, scoped, tag = 'internal scratch']
  #allocation2 [shape = 'f32[1,1]{1,0:T(1,128)S(6)}', space=smem, size = 0x200, scoped, tag = 'scoped memory for critic_forward.1']
  %s0 = inlined_call_operand.vmem [shape: bf16[64,32], index: 0, kind: input, shape index: {}]
  %s1 = inlined_call_operand.vmem [shape: bf16[32,32], index: 1, kind: input, shape index: {}]
  %s2 = inlined_call_operand.vmem [shape: f32[1,32], index: 2, kind: input, shape index: {}]
  %s3 = inlined_call_operand.vmem [shape: bf16[32,128], index: 3, kind: input, shape index: {}]
  %s4 = inlined_call_operand.vmem [shape: f32[1,128], index: 4, kind: input, shape index: {}]
  %s5 = inlined_call_operand.vmem [shape: f32[1,128], index: 5, kind: input, shape index: {}]
  %s6 = inlined_call_operand.<no memory space> [shape: f32[1,1], index: 6, kind: input, shape index: {}]
  %s7 = inlined_call_operand.vmem [shape: f32[64,1], index: 7, kind: output, shape index: {}]
  %s8 = sld [smem:[#allocation0]]
  $region61: #{critic_forward.1} parent=0
    _
  %s10 = ssub.s32 1, %s8
  %s11 = scalar_select 0, %s10, %s8
  %12 = sst [smem:[#allocation2]] %s6
  loop: start=0, step=1, limit=4
  $region2: #{critic_forward.1} parent=0 // loop_pre_header
    _
  $region3: #{critic_forward.1} parent=0 // loop_header
    %s14 = sphi 0, %s18
    %p15 = scmp.ge.s32.totalorder %s14, 4
    %s24 = sphi 0, %s26
    %s27 = sphi 0, %s24
    %s28 = sphi 0, %s27
    %s44 = sphi 0, %s28
    %s48 = sphi 0, %s48
    %s50 = sphi 0, %s48
    %s51 = sphi 0, %s50
    %s65 = sphi 0, %s51
    %s69 = sphi 0, %s69
    %s71 = sphi 0, %s69
    %s72 = sphi 0, %s71
    %s86 = sphi 0, %s72
    %s90 = sphi 0, %s90
    %s92 = sphi 0, %s90
    %s93 = sphi 0, %s92
    %s107 = sphi 0, %s93
    %s111 = sphi 0, %s111
    %s113 = sphi 0, %s111
    %s114 = sphi 0, %s113
    %s128 = sphi 0, %s114
    %s132 = sphi 0, %s132
    %s134 = sphi 0, %s132
    %s135 = sphi 0, %s134
    %s149 = sphi 0, %s135
    %s153 = sphi 0, %s153
    %s155 = sphi 0, %s153
    %s156 = sphi 0, %s155
    %s170 = sphi 0, %s156
    %s176 = sphi 0, %s178
    %s179 = sphi 0, %s176
    %s180 = sphi 0, %s179
    %s196 = sphi 0, %s180
  $region4: #{critic_forward.1} parent=0 // loop_header_branch
    %17 = sbr.rel (%p15) target = $region8
  $region5: #{critic_forward.1} parent=0 // loop_body
    %s19 = ssub.s32 %s14, 1
    %s20 = ssub.s32 %s14, 2
    %s21 = sadd.s32 %s14, 1
    %s22 = ssub.s32 %s14, %s21
    %p23 = scmp.eq.s32.totalorder %s22, 0
    %s25 = sadd.s32 %s24, 1
    %s26 = scalar_select %p23, %s24, %s25
    %p29 = pneg %p23
    %p30 = scmp.eq.s32.totalorder %s14, 1
    %p31 = por %p29, %p30
    %p32 = scmp.ne.s32.totalorder %s24, %s27
    %p33 = scmp.eq.s32.totalorder %s14, 0
    %p34 = por %p32, %p33
    %p35 = scmp.ne.s32.totalorder %s24, %s27
    %p36 = scmp.eq.s32.totalorder %s19, 1
    %p37 = por %p35, %p36
    %p38 = scmp.ne.s32.totalorder %s27, %s28
    %p39 = scmp.eq.s32.totalorder %s19, 0
    %p40 = por %p38, %p39
    %p41 = scmp.ne.s32.totalorder %s27, %s28
    %p42 = scmp.eq.s32.totalorder %s20, 1
    %p43 = por %p41, %p42
    %p45 = scmp.ne.s32.totalorder %s28, %s44
    %p46 = scmp.eq.s32.totalorder %s20, 0
    %p47 = por %p45, %p46
    %s49 = sadd.s32 %s48, 1
    %p52 = scmp.eq.s32.totalorder %s14, 1
    %p53 = scmp.ne.s32.totalorder %s48, %s50
    %p54 = scmp.eq.s32.totalorder %s14, 0
    %p55 = por %p53, %p54
    %p56 = scmp.ne.s32.totalorder %s48, %s50
    %p57 = scmp.eq.s32.totalorder %s19, 1
    %p58 = por %p56, %p57
    %p59 = scmp.ne.s32.totalorder %s50, %s51
    %p60 = scmp.eq.s32.totalorder %s19, 0
    %p61 = por %p59, %p60
    %p62 = scmp.ne.s32.totalorder %s50, %s51
    %p63 = scmp.eq.s32.totalorder %s20, 1
    %p64 = por %p62, %p63
    %p66 = scmp.ne.s32.totalorder %s51, %s65
    %p67 = scmp.eq.s32.totalorder %s20, 0
    %p68 = por %p66, %p67
    %s70 = sadd.s32 %s69, 1
    %p73 = scmp.eq.s32.totalorder %s14, 1
    %p74 = scmp.ne.s32.totalorder %s69, %s71
    %p75 = scmp.eq.s32.totalorder %s14, 0
    %p76 = por %p74, %p75
    %p77 = scmp.ne.s32.totalorder %s69, %s71
    %p78 = scmp.eq.s32.totalorder %s19, 1
    %p79 = por %p77, %p78
    %p80 = scmp.ne.s32.totalorder %s71, %s72
    %p81 = scmp.eq.s32.totalorder %s19, 0
    %p82 = por %p80, %p81
    %p83 = scmp.ne.s32.totalorder %s71, %s72
    %p84 = scmp.eq.s32.totalorder %s20, 1
    %p85 = por %p83, %p84
    %p87 = scmp.ne.s32.totalorder %s72, %s86
    %p88 = scmp.eq.s32.totalorder %s20, 0
    %p89 = por %p87, %p88
    %s91 = sadd.s32 %s90, 1
    %p94 = scmp.eq.s32.totalorder %s14, 1
    %p95 = scmp.ne.s32.totalorder %s90, %s92
    %p96 = scmp.eq.s32.totalorder %s14, 0
    %p97 = por %p95, %p96
    %p98 = scmp.ne.s32.totalorder %s90, %s92
    %p99 = scmp.eq.s32.totalorder %s19, 1
    %p100 = por %p98, %p99
    %p101 = scmp.ne.s32.totalorder %s92, %s93
    %p102 = scmp.eq.s32.totalorder %s19, 0
    %p103 = por %p101, %p102
    %p104 = scmp.ne.s32.totalorder %s92, %s93
    %p105 = scmp.eq.s32.totalorder %s20, 1
    %p106 = por %p104, %p105
    %p108 = scmp.ne.s32.totalorder %s93, %s107
    %p109 = scmp.eq.s32.totalorder %s20, 0
    %p110 = por %p108, %p109
    %s112 = sadd.s32 %s111, 1
    %p115 = scmp.eq.s32.totalorder %s14, 1
    %p116 = scmp.ne.s32.totalorder %s111, %s113
    %p117 = scmp.eq.s32.totalorder %s14, 0
    %p118 = por %p116, %p117
    %p119 = scmp.ne.s32.totalorder %s111, %s113
    %p120 = scmp.eq.s32.totalorder %s19, 1
    %p121 = por %p119, %p120
    %p122 = scmp.ne.s32.totalorder %s113, %s114
    %p123 = scmp.eq.s32.totalorder %s19, 0
    %p124 = por %p122, %p123
    %p125 = scmp.ne.s32.totalorder %s113, %s114
    %p126 = scmp.eq.s32.totalorder %s20, 1
    %p127 = por %p125, %p126
    %p129 = scmp.ne.s32.totalorder %s114, %s128
    %p130 = scmp.eq.s32.totalorder %s20, 0
    %p131 = por %p129, %p130
    %s133 = sadd.s32 %s132, 1
    %p136 = scmp.eq.s32.totalorder %s14, 1
    %p137 = scmp.ne.s32.totalorder %s132, %s134
    %p138 = scmp.eq.s32.totalorder %s14, 0
    %p139 = por %p137, %p138
    %p140 = scmp.ne.s32.totalorder %s132, %s134
    %p141 = scmp.eq.s32.totalorder %s19, 1
    %p142 = por %p140, %p141
    %p143 = scmp.ne.s32.totalorder %s134, %s135
    %p144 = scmp.eq.s32.totalorder %s19, 0
    %p145 = por %p143, %p144
    %p146 = scmp.ne.s32.totalorder %s134, %s135
    %p147 = scmp.eq.s32.totalorder %s20, 1
    %p148 = por %p146, %p147
    %p150 = scmp.ne.s32.totalorder %s135, %s149
    %p151 = scmp.eq.s32.totalorder %s20, 0
    %p152 = por %p150, %p151
    %s154 = sadd.s32 %s153, 1
    %p157 = scmp.eq.s32.totalorder %s14, 1
    %p158 = scmp.ne.s32.totalorder %s153, %s155
    %p159 = scmp.eq.s32.totalorder %s14, 0
    %p160 = por %p158, %p159
    %p161 = scmp.ne.s32.totalorder %s153, %s155
    %p162 = scmp.eq.s32.totalorder %s19, 1
    %p163 = por %p161, %p162
    %p164 = scmp.ne.s32.totalorder %s155, %s156
    %p165 = scmp.eq.s32.totalorder %s19, 0
    %p166 = por %p164, %p165
    %p167 = scmp.ne.s32.totalorder %s155, %s156
    %p168 = scmp.eq.s32.totalorder %s20, 1
    %p169 = por %p167, %p168
    %p171 = scmp.ne.s32.totalorder %s156, %s170
    %p172 = scmp.eq.s32.totalorder %s20, 0
    %p173 = por %p171, %p172
    %s174 = ssub.s32 %s14, %s21
    %p175 = scmp.eq.s32.totalorder %s174, 0
    %s177 = sadd.s32 %s176, 1
    %s178 = scalar_select %p175, %s176, %s177
    %p181 = pneg %p175
    %p182 = scmp.eq.s32.totalorder %s14, 1
    %p183 = por %p181, %p182
    %p184 = scmp.ne.s32.totalorder %s176, %s179
    %p185 = scmp.eq.s32.totalorder %s14, 0
    %p186 = por %p184, %p185
    %p187 = scmp.ne.s32.totalorder %s176, %s179
    %p188 = scmp.eq.s32.totalorder %s19, 1
    %p189 = por %p187, %p188
    %p190 = scmp.ne.s32.totalorder %s179, %s180
    %p191 = scmp.eq.s32.totalorder %s19, 0
    %p192 = por %p190, %p191
    %p193 = scmp.ne.s32.totalorder %s179, %s180
    %p194 = scmp.eq.s32.totalorder %s20, 1
    %p195 = por %p193, %p194
    %p197 = scmp.ne.s32.totalorder %s180, %s196
    %p198 = scmp.eq.s32.totalorder %s20, 0
    %p199 = por %p197, %p198
    %p200 = scmp.le.s32.totalorder 1, %s14
    %p201 = scmp.lt.s32.totalorder %s14, 3
    %p202 = pnand %p200, %p201
    %p203 = pneg %p202
    // Predicated region
    $region9: #{critic_forward.1} parent=5 // pred_check
      _
    $region10: #{critic_forward.1} parent=5 // pred_check_branch
      %205 = sbr.rel (%p202) target = $region12
    $region11: #{critic_forward.1} parent=5 // pred_region
      %s206 = ssub.s32 %s14, 1
      // Predicated region
      $region13: #{critic_forward.1} parent=11 // pred_check
        %p207 = pneg %p61
      $region14: #{critic_forward.1} parent=11 // pred_check_branch
        %209 = sbr.rel (%p207) target = $region16
      $region15: #{critic_forward.1} parent=11 // pred_region
        _
      $region16: #{critic_forward.1} parent=11 // pred_fallthru
        _
      // Predicated region
      $region17: #{critic_forward.1} parent=11 // pred_check
        %p210 = pneg %p82
      $region18: #{critic_forward.1} parent=11 // pred_check_branch
        %212 = sbr.rel (%p210) target = $region20
      $region19: #{critic_forward.1} parent=11 // pred_region
        _
      $region20: #{critic_forward.1} parent=11 // pred_fallthru
        _
      // Predicated region
      $region21: #{critic_forward.1} parent=11 // pred_check
        %p213 = pneg %p103
      $region22: #{critic_forward.1} parent=11 // pred_check_branch
        %215 = sbr.rel (%p213) target = $region24
      $region23: #{critic_forward.1} parent=11 // pred_region
        _
      $region24: #{critic_forward.1} parent=11 // pred_fallthru
        _
      // Predicated region
      $region25: #{critic_forward.1} parent=11 // pred_check
        %p216 = pneg %p124
      $region26: #{critic_forward.1} parent=11 // pred_check_branch
        %218 = sbr.rel (%p216) target = $region28
      $region27: #{critic_forward.1} parent=11 // pred_region
        _
      $region28: #{critic_forward.1} parent=11 // pred_fallthru
        _
      // Predicated region
      $region29: #{critic_forward.1} parent=11 // pred_check
        %p219 = pneg %p145
      $region30: #{critic_forward.1} parent=11 // pred_check_branch
        %221 = sbr.rel (%p219) target = $region32
      $region31: #{critic_forward.1} parent=11 // pred_region
        _
      $region32: #{critic_forward.1} parent=11 // pred_fallthru
        _
      // Predicated region
      $region33: #{critic_forward.1} parent=11 // pred_check
        %p222 = pneg %p166
      $region34: #{critic_forward.1} parent=11 // pred_check_branch
        %224 = sbr.rel (%p222) target = $region36
      $region35: #{critic_forward.1} parent=11 // pred_region
        _
      $region36: #{critic_forward.1} parent=11 // pred_fallthru
        _
    $region12: #{critic_forward.1} parent=5 // pred_fallthru
      _
    %p225 = scmp.lt.s32.totalorder %s14, 2
    // Predicated region
    $region37: #{critic_forward.1} parent=5 // pred_check
      %p226 = pneg %p225
    $region38: #{critic_forward.1} parent=5 // pred_check_branch
      %228 = sbr.rel (%p226) target = $region40
    $region39: #{critic_forward.1} parent=5 // pred_region
      // Predicated region
      $region41: #{critic_forward.1} parent=39 // pred_check
        %p229 = pneg %p34
      $region42: #{critic_forward.1} parent=39 // pred_check_branch
        %231 = sbr.rel (%p229) target = $region44
      $region43: #{critic_forward.1} parent=39 // pred_region
        %s232 = smul.u32 4, %s14
        %p233 = scmp.lt.s32.totalorder %s232, 7
        %s234 = scalar_select %p233, %s232, 7
        %s235 = smul.addr %s234, 4
        %s236 = scalar_lea.vmem %s0, %s235
        %s237 = smul.u32 4, %s14
      $region44: #{critic_forward.1} parent=39 // pred_fallthru
        _
    $region40: #{critic_forward.1} parent=5 // pred_fallthru
      _
    %p238 = scmp.le.s32.totalorder 1, %s14
    %p239 = scmp.lt.s32.totalorder %s14, 3
    %p240 = pnand %p238, %p239
    %p241 = pneg %p240
    // Predicated region
    $region45: #{critic_forward.1} parent=5 // pred_check
      _
    $region46: #{critic_forward.1} parent=5 // pred_check_branch
      %243 = sbr.rel (%p240) target = $region48
    $region47: #{critic_forward.1} parent=5 // pred_region
      %s244 = ssub.s32 %s14, 1
      %s245 = smul.u32 4, %s19
      %p246 = scmp.lt.s32.totalorder %s245, 7
      %s247 = scalar_select %p246, %s245, 7
      %s248 = smul.addr %s247, 4
      %s249 = scalar_lea.vmem %s0, %s248
      %p250 = pneg %p40
      %p251 = pneg %p37
      %p252 = pneg %p61
      %p253 = pneg %p58
      %p254 = pneg %p82
      %p255 = pneg %p79
      %p256 = pneg %p103
      %p257 = pneg %p100
      %p258 = pneg %p124
      %p259 = pneg %p121
      %p260 = pneg %p145
      %p261 = pneg %p142
      %p262 = pneg %p166
      %p263 = pneg %p163
      %p264 = pneg %p192
      %p265 = pneg %p189
      %s266 = smul.u32 4, %s19
      %p267 = scmp.lt.s32.totalorder %s266, 7
      %s268 = scalar_select %p267, %s266, 7
      %s269 = smul.addr %s268, 8
      %s270 = scalar_lea.vmem %s7, %s269
      %s271 = smul.u32 4, %s19
      %p272 = scmp.lt.s32.totalorder %s271, 7
      %s273 = scalar_select %p272, %s271, 7
      %s274 = smul.addr %s273, 4
      %s275 = scalar_lea.vmem %s0, %s274
      %s276 = smul.u32 4, %s19
      %s277 = smul.u32 4, %s19
      %p278 = scmp.lt.s32.totalorder %s277, 7
      %s279 = scalar_select %p278, %s277, 7
      %s280 = smul.addr %s279, 8
      %s281 = scalar_lea.vmem %s7, %s280
      %s282 = smul.u32 4, %s19
      %v284 = vld [vmem:[%s275] sm:$0xf]
      %v285 = vld [vmem:[%s275 + $0x4] sm:$0xf]
      %v286 = vld [vmem:[%s275 + $0x8] sm:$0xf]
      %v287 = vld [vmem:[%s275 + $0xc] sm:$0xf]
      %v288 = vld [vmem:[%s1] sm:$0xf]
      %v289 = vld [vmem:[%s1 + $0x4] sm:$0xf]
      %v290 = vld [vmem:[%s1 + $0x8] sm:$0xf]
      %v291 = vld [vmem:[%s1 + $0xc] sm:$0xf]
      %v292 = vld [vmem:[%s2] sm:$0x1]
      %v294 = vlaneseq
      %v295 = vshrl.u32 %v294, 7
      %v296 = vsub.s32 0, %v295
      %v297 = vrot.slane %v292, %v296
      %v303 = vunpack.c.l.b16 %v284
      %v304 = vunpack.c.l.b16 %v285
      %v305 = vunpack.c.l.b16 %v286
      %v306 = vunpack.c.l.b16 %v287
      %v307 = vpack.c.b16 %v304, %v303
      %v308 = vpack.c.b16 %v306, %v305
      %v313 = vunpack.c.l.b16 %v288
      %v314 = vunpack.c.l.b16 %v289
      %v315 = vunpack.c.l.b16 %v290
      %v316 = vunpack.c.l.b16 %v291
      %v317 = vpack.c.b16 %v314, %v313
      %v318 = vpack.c.b16 %v316, %v315
      %vm321 = vcmask 261120
      %v323 = vsel %vm321, %v307, 0
      %v326 = vsel %vm321, %v308, 0
      %328 = vmatprep.subr.bf16.mxu0 0
      %329 = vmatpush1.bf16.msra.mxu0 %v317
      %330 = vmatprep.subr.bf16.mxu0 0
      %331 = vmatpush1.bf16.msra.mxu0 %v318
      %332 = vmatprep.subr.bf16.mxu0 0
      %333 = vmatpush1.bf16.msra.mxu0 0
      %334 = vmatprep.subr.bf16.mxu0 0
      %335 = vmatpush1.bf16.msra.mxu0 0
      %336 = vmatprep.subr.bf16.mxu0 0
      %337 = vmatpush1.bf16.msra.mxu0 0
      %338 = vmatprep.subr.bf16.mxu0 0
      %339 = vmatpush1.bf16.msra.mxu0 0
      %340 = vmatprep.subr.bf16.mxu0 0
      %341 = vmatpush1.bf16.msra.mxu0 0
      %342 = vmatprep.subr.bf16.mxu0 0
      %343 = vmatpush1.bf16.msra.mxu0 0
      %344 = vmatprep.subr.bf16.mxu0 0
      %345 = vmatpush1.bf16.msra.mxu0 0
      %346 = vmatprep.subr.bf16.mxu0 0
      %347 = vmatpush1.bf16.msra.mxu0 0
      %348 = vmatprep.subr.bf16.mxu0 0
      %349 = vmatpush1.bf16.msra.mxu0 0
      %350 = vmatprep.subr.bf16.mxu0 0
      %351 = vmatpush1.bf16.msra.mxu0 0
      %352 = vmatprep.subr.bf16.mxu0 0
      %353 = vmatpush1.bf16.msra.mxu0 0
      %354 = vmatprep.subr.bf16.mxu0 0
      %355 = vmatpush1.bf16.msra.mxu0 0
      %356 = vmatprep.subr.bf16.mxu0 0
      %357 = vmatpush1.bf16.msra.mxu0 0
      %358 = vmatprep.subr.bf16.mxu0 0
      %359 = vmatpush1.bf16.msra.mxu0 0
      %360 = vmatprep.mubr.bf16.mxu0 0
      %361 = vmatmul.mubr.bf16.gmra.mrb[0].mxu0 %v323
      %v362 = vpop.f32.mrb[0].mxu0
      %v363 = vadd.f32 %v297, %v362
      %v364 = vpop.f32.mrb[0].mxu0
      %v365 = vpop.f32.mrb[0].mxu0
      %v366 = vadd.f32 %v297, %v365
      %v367 = vpop.f32.mrb[0].mxu0
      %368 = vmatprep.mubr.bf16.mxu0 0
      %369 = vmatmul.mubr.bf16.gmra.mrb[0].mxu0 %v326
      %v370 = vpop.f32.mrb[0].mxu0
      %v371 = vadd.f32 %v297, %v370
      %v372 = vpop.f32.mrb[0].mxu0
      %v373 = vpop.f32.mrb[0].mxu0
      %v374 = vadd.f32 %v297, %v373
      %v375 = vpop.f32.mrb[0].mxu0
      %376 = vdwg.mxu0
      %v377 = vmax.f32 %v363, 0.0
      %v378 = vmax.f32 %v366, 0.0
      %v379 = vmax.f32 %v371, 0.0
      %v380 = vmax.f32 %v374, 0.0
      %v381 = vpack.c.bf16 %v378, %v377
      %v382 = vpack.c.bf16 %v380, %v379
      %v383 = vld [vmem:[%s3] sm:$0xf]
      %v384 = vld [vmem:[%s3 + $0x4] sm:$0xf]
      %v385 = vld [vmem:[%s3 + $0x8] sm:$0xf]
      %v386 = vld [vmem:[%s3 + $0xc] sm:$0xf]
      %v387 = vld [vmem:[%s4] sm:$0x1]
      %v389 = vlaneseq
      %v390 = vshrl.u32 %v389, 7
      %v391 = vsub.s32 0, %v390
      %v392 = vrot.slane %v387, %v391
      %v398 = vunpack.c.l.b16 %v383
      %v399 = vunpack.c.l.b16 %v384
      %v400 = vunpack.c.l.b16 %v385
      %v401 = vunpack.c.l.b16 %v386
      %v402 = vpack.c.b16 %v399, %v398
      %v403 = vpack.c.b16 %v401, %v400
      %v407 = vsel %vm321, %v381, 0
      %v410 = vsel %vm321, %v382, 0
      %412 = vmatprep.subr.bf16.mxu0 0
      %413 = vmatpush1.bf16.msra.mxu0 %v402
      %414 = vmatprep.subr.bf16.mxu0 0
      %415 = vmatpush1.bf16.msra.mxu0 %v403
      %416 = vmatprep.subr.bf16.mxu0 0
      %417 = vmatpush1.bf16.msra.mxu0 0
      %418 = vmatprep.subr.bf16.mxu0 0
      %419 = vmatpush1.bf16.msra.mxu0 0
      %420 = vmatprep.subr.bf16.mxu0 0
      %421 = vmatpush1.bf16.msra.mxu0 0
      %422 = vmatprep.subr.bf16.mxu0 0
      %423 = vmatpush1.bf16.msra.mxu0 0
      %424 = vmatprep.subr.bf16.mxu0 0
      %425 = vmatpush1.bf16.msra.mxu0 0
      %426 = vmatprep.subr.bf16.mxu0 0
      %427 = vmatpush1.bf16.msra.mxu0 0
      %428 = vmatprep.subr.bf16.mxu0 0
      %429 = vmatpush1.bf16.msra.mxu0 0
      %430 = vmatprep.subr.bf16.mxu0 0
      %431 = vmatpush1.bf16.msra.mxu0 0
      %432 = vmatprep.subr.bf16.mxu0 0
      %433 = vmatpush1.bf16.msra.mxu0 0
      %434 = vmatprep.subr.bf16.mxu0 0
      %435 = vmatpush1.bf16.msra.mxu0 0
      %436 = vmatprep.subr.bf16.mxu0 0
      %437 = vmatpush1.bf16.msra.mxu0 0
      %438 = vmatprep.subr.bf16.mxu0 0
      %439 = vmatpush1.bf16.msra.mxu0 0
      %440 = vmatprep.subr.bf16.mxu0 0
      %441 = vmatpush1.bf16.msra.mxu0 0
      %442 = vmatprep.subr.bf16.mxu0 0
      %443 = vmatpush1.bf16.msra.mxu0 0
      %444 = vmatprep.mubr.bf16.mxu0 0
      %445 = vmatmul.mubr.bf16.gmra.mrb[0].mxu0 %v407
      %v446 = vpop.f32.mrb[0].mxu0
      %v447 = vadd.f32 %v392, %v446
      %v448 = vpop.f32.mrb[0].mxu0
      %v449 = vpop.f32.mrb[0].mxu0
      %v450 = vadd.f32 %v392, %v449
      %v451 = vpop.f32.mrb[0].mxu0
      %452 = vmatprep.mubr.bf16.mxu0 0
      %453 = vmatmul.mubr.bf16.gmra.mrb[0].mxu0 %v410
      %v454 = vpop.f32.mrb[0].mxu0
      %v455 = vadd.f32 %v392, %v454
      %v456 = vpop.f32.mrb[0].mxu0
      %v457 = vpop.f32.mrb[0].mxu0
      %v458 = vadd.f32 %v392, %v457
      %v459 = vpop.f32.mrb[0].mxu0
      %460 = vdwg.mxu0
      %v461 = vmax.f32 %v447, 0.0
      %v462 = vmax.f32 %v450, 0.0
      %v463 = vmax.f32 %v455, 0.0
      %v464 = vmax.f32 %v458, 0.0
      %v465 = vld [vmem:[%s5] sm:$0x1]
      %v467 = vlaneseq
      %v468 = vshrl.u32 %v467, 7
      %v469 = vsub.s32 0, %v468
      %v470 = vrot.slane %v465, %v469
      %v472 = vmul.f32 %v461, %v470
      %v473 = vmul.f32 %v462, %v470
      %v474 = vmul.f32 %v463, %v470
      %v475 = vmul.f32 %v464, %v470
      %476 = vadd.xlane.f32.xlu0 %v472
      %v477 = vpop.xlane.xlu0 %476
      %478 = vadd.xlane.f32.xlu0 %v473
      %v479 = vpop.xlane.xlu0 %478
      %480 = vadd.xlane.f32.xlu0 %v474
      %v481 = vpop.xlane.xlu0 %480
      %482 = vadd.xlane.f32.xlu0 %v475
      %v483 = vpop.xlane.xlu0 %482
      %s484 = sld [smem:[#allocation2]]
      %v485 = vstv %s484
      %v486 = vadd.f32 %v477, %v485
      %v487 = vadd.f32 %v479, %v485
      %v488 = vadd.f32 %v481, %v485
      %v489 = vadd.f32 %v483, %v485
      %vm490 = vcmask 7168
      %491 = vst.msk [vmem:[%s281] sm:$0xff] %vm490, %v486
      %492 = vst.msk [vmem:[%s281 + $0x8] sm:$0xff] %vm490, %v487
      %493 = vst.msk [vmem:[%s281 + $0x10] sm:$0xff] %vm490, %v488
      %494 = vst.msk [vmem:[%s281 + $0x18] sm:$0xff] %vm490, %v489
      %s495 = smul.u32 4, %s19
      %p496 = scmp.lt.s32.totalorder %s495, 7
      %s497 = scalar_select %p496, %s495, 7
      %s498 = smul.addr %s497, 8
      %s499 = scalar_lea.vmem %s7, %s498
      // Predicated region
      $region49: #{critic_forward.1} parent=47 // pred_check
        %p500 = pneg %p189
      $region50: #{critic_forward.1} parent=47 // pred_check_branch
        %502 = sbr.rel (%p500) target = $region52
      $region51: #{critic_forward.1} parent=47 // pred_region
        %s503 = smul.u32 4, %s19
      $region52: #{critic_forward.1} parent=47 // pred_fallthru
        _
    $region48: #{critic_forward.1} parent=5 // pred_fallthru
      _
    %p504 = scmp.le.s32.totalorder 2, %s14
    // Predicated region
    $region53: #{critic_forward.1} parent=5 // pred_check
      %p505 = pneg %p504
    $region54: #{critic_forward.1} parent=5 // pred_check_branch
      %507 = sbr.rel (%p505) target = $region56
    $region55: #{critic_forward.1} parent=5 // pred_region
      %s508 = ssub.s32 %s14, 2
      // Predicated region
      $region57: #{critic_forward.1} parent=55 // pred_check
        %p509 = pneg %p195
      $region58: #{critic_forward.1} parent=55 // pred_check_branch
        %511 = sbr.rel (%p509) target = $region60
      $region59: #{critic_forward.1} parent=55 // pred_region
        %s512 = smul.u32 4, %s20
        %p513 = scmp.lt.s32.totalorder %s512, 7
        %s514 = scalar_select %p513, %s512, 7
        %s515 = smul.addr %s514, 8
        %s516 = scalar_lea.vmem %s7, %s515
      $region60: #{critic_forward.1} parent=55 // pred_fallthru
        _
    $region56: #{critic_forward.1} parent=5 // pred_fallthru
      _
  $region6: #{critic_forward.1} parent=0 // loop_footer
    %s18 = sadd.s32 1, %s14
  $region7: #{critic_forward.1} parent=0 // loop_footer_branch
    %13 = sbr.rel target = $region3
  $region8: #{critic_forward.1} parent=0 // loop_exit
    _

</llo_original>
